<compile_context>
chip_gen: v6e
topology: v6e:2x2x1
jax: 0.10.0
libtpu: 0.0.40
codegen_flags: <defaults>
</compile_context>

<pallas_src>
import functools

import jax
import jax.numpy as jnp
import numpy as np
from jax.experimental import pallas as pl
from jax.experimental.pallas import tpu as pltpu


def _round_up(x, n):
    return ((x + n - 1) // n) * n


def _bootstrap_mean_reference_jnp(prev, dt, inv_m):
    """Plain-XLA path for tiny problems (and numerical reference)."""
    x0 = prev[..., 0]
    x1 = prev[..., 1]
    x2 = prev[..., 2]
    return jnp.stack([x0, x1 + dt * x2, x2 + dt * inv_m * x0], axis=-1)


def _bootstrap_mean_kernel(x_ref, m1_ref, m2_ref, o_ref):
    """One (TILE_S, L) tile of the batch-collapsed flat latents.

    Flat layout within a row: [p.x0, p.x1, p.x2, p'.x0, ...].  L % 3 == 0, so
    lane % 3 is the component index and no particle straddles a row.

    mask1[lane] = dt     if lane % 3 == 1 else 0
    mask2[lane] = dt / m if lane % 3 == 2 else 0
    so   o = x + mask1 * x[lane+1] + mask2 * x[lane-2]
    reproduces  mean = prev + dt * (0, x2, x0/m)  per particle.  Wrap-around
    lanes of the rolls (lane L-1 for +1, lanes 0/1 for -2) always carry a zero
    mask, so they never contribute.
    """
    x = x_ref[...]                                   # (TILE_S, L)
    L = x.shape[-1]
    # jnp.roll semantics: result[:, j] = x[:, (j - shift) % L]
    x_next = pltpu.roll(x, shift=L - 1, axis=1)      # x_next[:, j]  = x[:, j+1]
    x_prev2 = pltpu.roll(x, shift=2, axis=1)         # x_prev2[:, j] = x[:, j-2]

    xf = x.astype(jnp.float32)
    o = (xf
         + m1_ref[...] * x_next.astype(jnp.float32)   # (1, L) broadcast over sublanes
         + m2_ref[...] * x_prev2.astype(jnp.float32))
    o_ref[...] = o.astype(o_ref.dtype)               # full-tile lane-dense store


def bootstrap_mean_pallas(prev, *, m, dt, lane_tile=1536, max_sublane_tile=512,
                          min_particles_for_pallas=256):
    """prev: [B, P, 3] -> mean: [B, P, 3]  (time != 0 proposal mean)."""
    B, P, D = prev.shape
    assert D == 3, "latent dim must be 3"
    dt = float(dt)
    inv_m = float(1.0 / m)

    # Size gate: at tiny B*P the Pallas launch/per-step overhead dwarfs the
    # math; let XLA fuse the elementwise expression.  (Crossover should be
    # measured on-device; default is deliberately low per review.)
    if (B * P) < min_particles_for_pallas or not jnp.issubdtype(prev.dtype, jnp.floating):
        return _bootstrap_mean_reference_jnp(prev, dt, inv_m)

    L = int(lane_tile)
    assert L % 384 == 0, "lane_tile must be a multiple of lcm(3,128)=384"

    # ---- batch-collapsed flat view -------------------------------------
    F = B * P * 3                       # row-major flatten of (B, P, 3) is free
    x = prev.reshape(F)
    Fp = _round_up(F, L)
    if Fp != F:
        # Ragged tail only: pad < L elements (< 6 KiB of zeros) so the flat
        # vector reshapes to (R, L).  Aligned shapes (F % L == 0) take the
        # zero-copy path.  Row-count raggedness (R % TILE_S) is handled by
        # Pallas partial last blocks, not by padding.
        x = jnp.concatenate([x, jnp.zeros((Fp - F,), dtype=x.dtype)])
    R = Fp // L
    x = x.reshape(R, L)

    # ---- tile selection --------------------------------------------------
    itemsize = jnp.dtype(prev.dtype).itemsize
    sub_min = {4: 8, 2: 16, 1: 32}.get(itemsize, 8)   # dtype-dependent sublane min
    assert max_sublane_tile % sub_min == 0 or max_sublane_tile >= sub_min
    # Aim for >= 2 grid steps (v7x has 2 TensorCores) while capping the block
    # at max_sublane_tile x L (default 512x1536 f32 = 3 MiB; ~12 MiB total with
    # double-buffered input+output -> fits every chip's scoped VMEM).
    TILE_S = min(max(sub_min, max_sublane_tile),
                 max(sub_min, _round_up(pl.cdiv(R, 2), sub_min)))
    num_tiles = pl.cdiv(R, TILE_S)

    # ---- constant lane masks (dt folded in), DMA'd once, VMEM-resident ----
    lane = np.arange(L)
    c = lane % 3
    m1 = jnp.asarray((dt * (c == 1)).astype(np.float32).reshape(1, L))
    m2 = jnp.asarray((dt * inv_m * (c == 2)).astype(np.float32).reshape(1, L))

    out = pl.pallas_call(
        _bootstrap_mean_kernel,
        out_shape=jax.ShapeDtypeStruct((R, L), prev.dtype),
        grid=(num_tiles,),
        in_specs=[
            pl.BlockSpec((TILE_S, L), lambda r: (r, 0)),
            pl.BlockSpec((1, L), lambda r: (0, 0)),      # mask1: same block every step
            pl.BlockSpec((1, L), lambda r: (0, 0)),      # mask2
        ],
        out_specs=pl.BlockSpec((TILE_S, L), lambda r: (r, 0)),
        compiler_params=pltpu.CompilerParams(
            # 1-D independent grid -> megacore sharding on v7x; harmless on
            # v5e/v6e.  Explicit VMEM limit leaves headroom on every chip
            # (<= v6e/v7x defaults, well under v5e's 128 MiB physical).
            dimension_semantics=("parallel",),
            vmem_limit_bytes=32 * 1024 * 1024,
        ),
    )(x, m1, m2)

    out = out.reshape(Fp)
    if Fp != F:
        out = out[:F]
    return out.reshape(B, P, 3)


class BootstrapProposal:
    """JAX/Pallas port of Bootstrap_Proposal (returns distribution parameters)."""

    def __init__(self, m, dt, scale_0, mu_0, scale_force, scale_aux):
        self.m = float(m)
        self.dt = float(dt)
        self.cov_0 = jnp.eye(3, dtype=jnp.float32) * (scale_0 ** 2)
        self.mu_0 = jnp.ones(3, dtype=jnp.float32) * mu_0
        self.scale_force = float(scale_force)
        self.scale_aux = float(scale_aux)
        # Constant per-particle covariance: keep only the diagonal / 3x3 form;
        # do NOT broadcast to [B, P, 3, 3] (9 f32/particle of pure HBM traffic).
        self.cov_diag = jnp.array(
            [self.dt ** 2 * self.scale_force ** 2,
             self.scale_aux ** 2,
             self.scale_aux ** 2],
            dtype=jnp.float32,
        )
        self.diag_mat = jnp.diag(self.cov_diag)   # (3, 3), unexpanded

    def forward(self, previous_latents=None, time=None, observations=None):
        # TODO(synk): torch.distributions.MultivariateNormal wrapped by
        # aesmc.state.set_batch_shape_mode has no Pallas/JAX-array equivalent;
        # we return the distribution parameters plus a batch-shape-mode tag.
        if time == 0:
            batch_size = observations[-1].shape[0]
            loc = jnp.broadcast_to(self.mu_0, (batch_size, 3))
            cov = jnp.broadcast_to(self.cov_0, (batch_size, 3, 3))
            return {"loc": loc,
                    "covariance_matrix": cov,
                    "batch_shape_mode": "BATCH_EXPANDED"}
        else:
            prev = previous_latents[-1]                       # [B, P, 3]
            mean = bootstrap_mean_pallas(prev, m=self.m, dt=self.dt)
            # Covariance is identical for every (batch, particle): return the
            # diagonal and the tiny 3x3; consumers should broadcast lazily /
            # use the diagonal form instead of a [B, P, 3, 3] slab.
            return {"loc": mean,
                    "covariance_diag": self.cov_diag,
                    "covariance_matrix": self.diag_mat,
                    "batch_shape_mode": "FULLY_EXPANDED"}


if __name__ == "__main__":
    m, dt = 2.0, 0.1
    scale_0, mu_0, scale_force, scale_aux = 1.0, 0.0, 0.5, 0.01
    proposal = BootstrapProposal(m, dt, scale_0, mu_0, scale_force, scale_aux)

    key = jax.random.PRNGKey(0)
    kA, kB, kC, kD, kObs = jax.random.split(key, 5)

    def ref_mean(prev_np):
        ax = np.zeros_like(prev_np)
        ax[:, :, 1] = prev_np[:, :, 2]
        ax[:, :, 2] = prev_np[:, :, 0] * (1.0 / m)
        return prev_np + dt * ax

    # (A) Pallas hot path, aligned flat size (B*P*3 % 1536 == 0): zero-copy
    #     batch-collapsed path, 2 grid steps.
    prevA = jax.random.normal(kA, (2, 4096, 3), dtype=jnp.float32)
    outA = proposal.forward(previous_latents=[prevA], time=1)
    meanA = jax.block_until_ready(outA["loc"])
    np.testing.assert_allclose(np.asarray(meanA), ref_mean(np.asarray(prevA)),
                               rtol=1e-6, atol=1e-6)

    # (B) Pallas hot path, ragged flat size (exercises tail pad + partial last
    #     row block): P=5000.
    prevB = jax.random.normal(kB, (2, 5000, 3), dtype=jnp.float32)
    outB = proposal.forward(previous_latents=[prevB], time=1)
    meanB = jax.block_until_ready(outB["loc"])
    np.testing.assert_allclose(np.asarray(meanB), ref_mean(np.asarray(prevB)),
                               rtol=1e-6, atol=1e-6)

    # (C) Direct kernel call with small tiles -> multi-step grid + ragged pad.
    prevC = jax.random.normal(kC, (2, 2000, 3), dtype=jnp.float32)
    meanC = bootstrap_mean_pallas(prevC, m=m, dt=dt, lane_tile=384,
                                  max_sublane_tile=8, min_particles_for_pallas=1)
    meanC = jax.block_until_ready(meanC)
    np.testing.assert_allclose(np.asarray(meanC), ref_mean(np.asarray(prevC)),
                               rtol=1e-6, atol=1e-6)

    # (D) Tiny problem: routed through the jnp size gate (no pallas_call).
    prevD = jax.random.normal(kD, (2, 8, 3), dtype=jnp.float32)
    outD = proposal.forward(previous_latents=[prevD], time=1)
    meanD = jax.block_until_ready(outD["loc"])
    np.testing.assert_allclose(np.asarray(meanD), ref_mean(np.asarray(prevD)),
                               rtol=1e-6, atol=1e-6)

    # Covariance: constant diagonal / 3x3 (not a [B,P,3,3] slab).
    np.testing.assert_allclose(
        np.asarray(outA["covariance_diag"]),
        np.array([dt ** 2 * scale_force ** 2, scale_aux ** 2, scale_aux ** 2],
                 dtype=np.float32),
        rtol=1e-6, atol=0.0)
    np.testing.assert_allclose(
        np.asarray(outA["covariance_matrix"]),
        np.diag([dt ** 2 * scale_force ** 2, scale_aux ** 2, scale_aux ** 2]),
        rtol=1e-6, atol=0.0)

    # time == 0 branch (pure broadcast, no kernel).
    observations = [jax.random.normal(kObs, (2, 1), dtype=jnp.float32)]
    out0 = proposal.forward(previous_latents=None, time=0,
                            observations=observations)
    loc0 = jax.block_until_ready(out0["loc"])
    np.testing.assert_allclose(np.asarray(loc0), np.zeros((2, 3)), atol=1e-6)
    np.testing.assert_allclose(np.asarray(out0["covariance_matrix"]),
                               np.broadcast_to(np.eye(3), (2, 3, 3)), atol=1e-6)

    print("KERNEL_OK")
</pallas_src>

<mosaic_0001>
module attributes {stable_mosaic.version = 11 : i64} {
  func.func @_bootstrap_mean_kernel(%arg0: i32, %arg1: memref<8x1536xf32, #tpu.memory_space<vmem>>, %arg2: memref<1x1536xf32, #tpu.memory_space<vmem>>, %arg3: memref<1x1536xf32, #tpu.memory_space<vmem>>, %arg4: memref<8x1536xf32, #tpu.memory_space<vmem>>) attributes {dimension_semantics = [#tpu.dimension_semantics<parallel>], iteration_bounds = array<i64: 2>, scalar_prefetch = 0 : i64, scratch_operands = 0 : i64, tpu.core_type = #tpu.core_type<tc>, window_params = [{transform_indices = @transform_0, window_bounds = array<i64: 8, 1536>}, {pipeline_mode = #tpu.pipeline_mode<synchronous>, transform_indices = @transform_1, window_bounds = array<i64: 1, 1536>}, {pipeline_mode = #tpu.pipeline_mode<synchronous>, transform_indices = @transform_2, window_bounds = array<i64: 1, 1536>}, {transform_indices = @transform_3, window_bounds = array<i64: 8, 1536>}]} {
    %c0 = arith.constant 0 : index
    %c0_0 = arith.constant 0 : index
    %0 = vector.load %arg1[%c0, %c0_0] : memref<8x1536xf32, #tpu.memory_space<vmem>>, vector<8x1536xf32>
    %c1535_i32 = arith.constant 1535 : i32
    %1 = tpu.dynamic_rotate %0 by %c1535_i32 dim 1 : vector<8x1536xf32>, i32 -> vector<8x1536xf32>
    %c2_i32 = arith.constant 2 : i32
    %2 = tpu.dynamic_rotate %0 by %c2_i32 dim 1 : vector<8x1536xf32>, i32 -> vector<8x1536xf32>
    %c0_1 = arith.constant 0 : index
    %c0_2 = arith.constant 0 : index
    %3 = vector.load %arg2[%c0_1, %c0_2] : memref<1x1536xf32, #tpu.memory_space<vmem>>, vector<1x1536xf32>
    %4 = vector.broadcast %3 : vector<1x1536xf32> to vector<8x1536xf32>
    %5 = arith.mulf %4, %1 : vector<8x1536xf32>
    %6 = arith.addf %0, %5 : vector<8x1536xf32>
    %c0_3 = arith.constant 0 : index
    %c0_4 = arith.constant 0 : index
    %7 = vector.load %arg3[%c0_3, %c0_4] : memref<1x1536xf32, #tpu.memory_space<vmem>>, vector<1x1536xf32>
    %8 = vector.broadcast %7 : vector<1x1536xf32> to vector<8x1536xf32>
    %9 = arith.mulf %8, %2 : vector<8x1536xf32>
    %10 = arith.addf %6, %9 : vector<8x1536xf32>
    %c0_5 = arith.constant 0 : index
    %c0_6 = arith.constant 0 : index
    %11 = vector.load %arg4[%c0_5, %c0_6] : memref<8x1536xf32, #tpu.memory_space<vmem>>, vector<8x1536xf32>
    tpu.vector_store %arg4[%c0_5, %c0_6], %10 {strides = array<i32>} : memref<8x1536xf32, #tpu.memory_space<vmem>>, vector<8x1536xf32>,
    return
  }
  func.func @transform_0(%arg0: i32) -> (i32, i32) {
    %c0_i32 = arith.constant 0 : i32
    %c0_i32_0 = arith.constant 0 : i32
    return %arg0, %c0_i32 : i32, i32
  }
  func.func @transform_1(%arg0: i32) -> (i32, i32) {
    %c0_i32 = arith.constant 0 : i32
    %c0_i32_0 = arith.constant 0 : i32
    %c0_i32_1 = arith.constant 0 : i32
    return %c0_i32, %c0_i32_0 : i32, i32
  }
  func.func @transform_2(%arg0: i32) -> (i32, i32) {
    %c0_i32 = arith.constant 0 : i32
    %c0_i32_0 = arith.constant 0 : i32
    %c0_i32_1 = arith.constant 0 : i32
    return %c0_i32, %c0_i32_0 : i32, i32
  }
  func.func @transform_3(%arg0: i32) -> (i32, i32) {
    %c0_i32 = arith.constant 0 : i32
    %c0_i32_0 = arith.constant 0 : i32
    return %arg0, %c0_i32 : i32, i32
  }
}

</mosaic_0001>

<llo_original>
// kernel: tpu_custom_call.1
$region0: #{tpu_custom_call.1}
  #allocation0 [shape = 'u32[]', space=smem, size = 0x4, offset = 0x4, fixed_abs, tag = 'smem constant byte address 0x4 - core index']
  #allocation1 [shape = 'u32[144,128]{1,0:T(1,128)}', space=vmem, size = 0x12000, scoped, tag = 'internal scratch']
  %s0 = inlined_call_operand.hbm [shape: f32[16,1536], index: 0, kind: input, shape index: {}]
  %s1 = inlined_call_operand.hbm [shape: f32[1,1536], index: 1, kind: input, shape index: {}]
  %s2 = inlined_call_operand.hbm [shape: f32[1,1536], index: 2, kind: input, shape index: {}]
  %s3 = inlined_call_operand.hbm [shape: f32[16,1536], index: 3, kind: output, shape index: {}]
  %s4 = sld [smem:[#allocation0]]
  $region57: #{tpu_custom_call.1} parent=0
    _
  %s6 = ssub.s32 1, %s4
  %s7 = scalar_select 0, %s6, %s4
  $region1: #{tpu_custom_call.1} parent=0
    #allocation2 [shape = 'u8[98304]{0}', space=vmem, size = 0x18000, scoped, tag = 'input window, operand 0']
    #allocation3 [shape = 's32[2]{0}', space=sflag, size = 0x8, scoped, tag = 'scoped memory for tpu_custom_call.1']
    #allocation4 [shape = 's32[2]{0}', space=sflag, size = 0x8, scoped, tag = 'scoped memory for tpu_custom_call.1']
    #allocation5 [shape = 'u8[6144]{0}', space=vmem, size = 0x1800, scoped, tag = 'input window, operand 1, single buffered']
    #allocation6 [shape = 's32[1]{0}', space=sflag, size = 0x4, scoped, tag = 'scoped memory for tpu_custom_call.1']
    #allocation7 [shape = 'u8[6144]{0}', space=vmem, size = 0x1800, scoped, tag = 'input window, operand 2, single buffered']
    #allocation8 [shape = 'u8[98304]{0}', space=vmem, size = 0x18000, scoped, tag = 'output window, operand 0']
    %8 = vsyncpa [#allocation3], 0
    %s9 = scalar_lea.sflag [#allocation3], 1
    %10 = vsyncpa %s9, 0
    %11 = vsyncpa [#allocation6], 0
    %12 = vsyncpa [#allocation4], 0
    %s13 = scalar_lea.sflag [#allocation4], 1
    %14 = vsyncpa %s13, 0
    loop: start=0, step=1, limit=4
    $region2: #{tpu_custom_call.1} parent=1 // loop_pre_header
      _
    $region3: #{tpu_custom_call.1} parent=1 // loop_header
      %s16 = sphi 0, %s20
      %p17 = scmp.ge.s32.totalorder %s16, 4
      %s26 = sphi 0, %s28
      %s29 = sphi 0, %s26
      %s30 = sphi 0, %s29
      %s46 = sphi 0, %s30
      %s50 = sphi 0, %s50
      %s52 = sphi 0, %s50
      %s53 = sphi 0, %s52
      %s67 = sphi 0, %s53
      %s71 = sphi 0, %s71
      %s73 = sphi 0, %s71
      %s74 = sphi 0, %s73
      %s88 = sphi 0, %s74
      %s94 = sphi 0, %s96
      %s97 = sphi 0, %s94
      %s98 = sphi 0, %s97
      %s114 = sphi 0, %s98
    $region4: #{tpu_custom_call.1} parent=1 // loop_header_branch
      %19 = sbr.rel (%p17) target = $region8
    $region5: #{tpu_custom_call.1} parent=1 // loop_body
      %s21 = ssub.s32 %s16, 1
      %s22 = ssub.s32 %s16, 2
      %s23 = sadd.s32 %s16, 1
      %s24 = ssub.s32 %s16, %s23
      %p25 = scmp.eq.s32.totalorder %s24, 0
      %s27 = sadd.s32 %s26, 1
      %s28 = scalar_select %p25, %s26, %s27
      %p31 = pneg %p25
      %p32 = scmp.eq.s32.totalorder %s16, 1
      %p33 = por %p31, %p32
      %p34 = scmp.ne.s32.totalorder %s26, %s29
      %p35 = scmp.eq.s32.totalorder %s16, 0
      %p36 = por %p34, %p35
      %p37 = scmp.ne.s32.totalorder %s26, %s29
      %p38 = scmp.eq.s32.totalorder %s21, 1
      %p39 = por %p37, %p38
      %p40 = scmp.ne.s32.totalorder %s29, %s30
      %p41 = scmp.eq.s32.totalorder %s21, 0
      %p42 = por %p40, %p41
      %p43 = scmp.ne.s32.totalorder %s29, %s30
      %p44 = scmp.eq.s32.totalorder %s22, 1
      %p45 = por %p43, %p44
      %p47 = scmp.ne.s32.totalorder %s30, %s46
      %p48 = scmp.eq.s32.totalorder %s22, 0
      %p49 = por %p47, %p48
      %s51 = sadd.s32 %s50, 1
      %p54 = scmp.eq.s32.totalorder %s16, 1
      %p55 = scmp.ne.s32.totalorder %s50, %s52
      %p56 = scmp.eq.s32.totalorder %s16, 0
      %p57 = por %p55, %p56
      %p58 = scmp.ne.s32.totalorder %s50, %s52
      %p59 = scmp.eq.s32.totalorder %s21, 1
      %p60 = por %p58, %p59
      %p61 = scmp.ne.s32.totalorder %s52, %s53
      %p62 = scmp.eq.s32.totalorder %s21, 0
      %p63 = por %p61, %p62
      %p64 = scmp.ne.s32.totalorder %s52, %s53
      %p65 = scmp.eq.s32.totalorder %s22, 1
      %p66 = por %p64, %p65
      %p68 = scmp.ne.s32.totalorder %s53, %s67
      %p69 = scmp.eq.s32.totalorder %s22, 0
      %p70 = por %p68, %p69
      %s72 = sadd.s32 %s71, 1
      %p75 = scmp.eq.s32.totalorder %s16, 1
      %p76 = scmp.ne.s32.totalorder %s71, %s73
      %p77 = scmp.eq.s32.totalorder %s16, 0
      %p78 = por %p76, %p77
      %p79 = scmp.ne.s32.totalorder %s71, %s73
      %p80 = scmp.eq.s32.totalorder %s21, 1
      %p81 = por %p79, %p80
      %p82 = scmp.ne.s32.totalorder %s73, %s74
      %p83 = scmp.eq.s32.totalorder %s21, 0
      %p84 = por %p82, %p83
      %p85 = scmp.ne.s32.totalorder %s73, %s74
      %p86 = scmp.eq.s32.totalorder %s22, 1
      %p87 = por %p85, %p86
      %p89 = scmp.ne.s32.totalorder %s74, %s88
      %p90 = scmp.eq.s32.totalorder %s22, 0
      %p91 = por %p89, %p90
      %s92 = ssub.s32 %s16, %s23
      %p93 = scmp.eq.s32.totalorder %s92, 0
      %s95 = sadd.s32 %s94, 1
      %s96 = scalar_select %p93, %s94, %s95
      %p99 = pneg %p93
      %p100 = scmp.eq.s32.totalorder %s16, 1
      %p101 = por %p99, %p100
      %p102 = scmp.ne.s32.totalorder %s94, %s97
      %p103 = scmp.eq.s32.totalorder %s16, 0
      %p104 = por %p102, %p103
      %p105 = scmp.ne.s32.totalorder %s94, %s97
      %p106 = scmp.eq.s32.totalorder %s21, 1
      %p107 = por %p105, %p106
      %p108 = scmp.ne.s32.totalorder %s97, %s98
      %p109 = scmp.eq.s32.totalorder %s21, 0
      %p110 = por %p108, %p109
      %p111 = scmp.ne.s32.totalorder %s97, %s98
      %p112 = scmp.eq.s32.totalorder %s22, 1
      %p113 = por %p111, %p112
      %p115 = scmp.ne.s32.totalorder %s98, %s114
      %p116 = scmp.eq.s32.totalorder %s22, 0
      %p117 = por %p115, %p116
      %p118 = scmp.le.s32.totalorder 1, %s16
      %p119 = scmp.lt.s32.totalorder %s16, 3
      %p120 = pnand %p118, %p119
      %p121 = pneg %p120
      // Predicated region
      $region9: #{tpu_custom_call.1} parent=5 // pred_check
        _
      $region10: #{tpu_custom_call.1} parent=5 // pred_check_branch
        %123 = sbr.rel (%p120) target = $region12
      $region11: #{tpu_custom_call.1} parent=5 // pred_region
        %s124 = ssub.s32 %s16, 1
        // Predicated region
        $region13: #{tpu_custom_call.1} parent=11 // pred_check
          %p125 = pneg %p63
        $region14: #{tpu_custom_call.1} parent=11 // pred_check_branch
          %127 = sbr.rel (%p125) target = $region16
        $region15: #{tpu_custom_call.1} parent=11 // pred_region
          %s129 = ssub.s32 192, 192
          %130 = vsyncadd [#allocation6], %s129
          %s132 = sshll.u32 [#allocation5], 4
          %s133 = int_to_ptr.vmem [resolvable:$true] %s132
          %135 = dma.hbm_to_vmem [thread:$0]  %s1, 192, %s133, [#allocation6]
        $region16: #{tpu_custom_call.1} parent=11 // pred_fallthru
          _
        // Predicated region
        $region17: #{tpu_custom_call.1} parent=11 // pred_check
          %p136 = pneg %p84
        $region18: #{tpu_custom_call.1} parent=11 // pred_check_branch
          %138 = sbr.rel (%p136) target = $region20
        $region19: #{tpu_custom_call.1} parent=11 // pred_region
          %s140 = ssub.s32 192, 192
          %141 = vsyncadd [#allocation6], %s140
          %s143 = sshll.u32 [#allocation7], 4
          %s144 = int_to_ptr.vmem [resolvable:$true] %s143
          %146 = dma.hbm_to_vmem [thread:$0]  %s2, 192, %s144, [#allocation6]
        $region20: #{tpu_custom_call.1} parent=11 // pred_fallthru
          _
      $region12: #{tpu_custom_call.1} parent=5 // pred_fallthru
        _
      %p147 = scmp.lt.s32.totalorder %s16, 2
      // Predicated region
      $region21: #{tpu_custom_call.1} parent=5 // pred_check
        %p148 = pneg %p147
      $region22: #{tpu_custom_call.1} parent=5 // pred_check_branch
        %150 = sbr.rel (%p148) target = $region24
      $region23: #{tpu_custom_call.1} parent=5 // pred_region
        // Predicated region
        $region25: #{tpu_custom_call.1} parent=23 // pred_check
          %p151 = pneg %p36
        $region26: #{tpu_custom_call.1} parent=23 // pred_check_branch
          %153 = sbr.rel (%p151) target = $region28
        $region27: #{tpu_custom_call.1} parent=23 // pred_region
          %s154 = sand.u32 %s26, 1
          %s155 = scalar_lea.sflag [#allocation3], %s154
          %s156 = sand.u32 %s26, 1
          %s157 = smul.addr %s156, 96
          %s158 = scalar_lea.vmem [#allocation2], %s157
          %s160 = ssub.s32 1536, 1536
          %161 = vsyncadd %s155, %s160
          %s162 = smul.addr %s16, 12
          %s163 = smul.addr %s162, 128
          %s164 = scalar_lea.hbm %s0, %s163
          %s166 = sshll.u32 %s158, 4
          %s167 = int_to_ptr.vmem [resolvable:$true] %s166
          %169 = dma.hbm_to_vmem [thread:$0]  %s164, 1536, %s167, %s155
        $region28: #{tpu_custom_call.1} parent=23 // pred_fallthru
          _
      $region24: #{tpu_custom_call.1} parent=5 // pred_fallthru
        _
      %p170 = scmp.le.s32.totalorder 1, %s16
      %p171 = scmp.lt.s32.totalorder %s16, 3
      %p172 = pnand %p170, %p171
      %p173 = pneg %p172
      // Predicated region
      $region29: #{tpu_custom_call.1} parent=5 // pred_check
        _
      $region30: #{tpu_custom_call.1} parent=5 // pred_check_branch
        %175 = sbr.rel (%p172) target = $region32
      $region31: #{tpu_custom_call.1} parent=5 // pred_region
        %s176 = ssub.s32 %s16, 1
        %s177 = sand.u32 %s29, 1
        %s178 = scalar_lea.sflag [#allocation3], %s177
        %s179 = sand.u32 %s29, 1
        %s180 = smul.addr %s179, 96
        %s181 = scalar_lea.vmem [#allocation2], %s180
        // Predicated region
        $region33: #{tpu_custom_call.1} parent=31 // pred_check
          %p182 = pneg %p42
        $region34: #{tpu_custom_call.1} parent=31 // pred_check_branch
          %184 = sbr.rel (%p182) target = $region36
        $region35: #{tpu_custom_call.1} parent=31 // pred_region
          %185 = dma.done %s178, 1536
        $region36: #{tpu_custom_call.1} parent=31 // pred_fallthru
          _
        // Predicated region
        $region37: #{tpu_custom_call.1} parent=31 // pred_check
          %p186 = pneg %p63
        $region38: #{tpu_custom_call.1} parent=31 // pred_check_branch
          %188 = sbr.rel (%p186) target = $region40
        $region39: #{tpu_custom_call.1} parent=31 // pred_region
          %189 = dma.done [#allocation6], 192
        $region40: #{tpu_custom_call.1} parent=31 // pred_fallthru
          _
        // Predicated region
        $region41: #{tpu_custom_call.1} parent=31 // pred_check
          %p190 = pneg %p84
        $region42: #{tpu_custom_call.1} parent=31 // pred_check_branch
          %192 = sbr.rel (%p190) target = $region44
        $region43: #{tpu_custom_call.1} parent=31 // pred_region
          %193 = dma.done [#allocation6], 192
        $region44: #{tpu_custom_call.1} parent=31 // pred_fallthru
          _
        %s194 = sand.u32 %s29, 1
        %s195 = scalar_lea.sflag [#allocation3], %s194
        %s196 = sand.u32 %s29, 1
        %s197 = smul.addr %s196, 96
        %s198 = scalar_lea.vmem [#allocation2], %s197
        %p199 = pneg %p42
        %p200 = pneg %p39
        %p201 = pneg %p63
        %p202 = pneg %p60
        %p203 = pneg %p84
        %p204 = pneg %p81
        %p205 = pneg %p110
        %p206 = pneg %p107
        %s207 = sand.u32 %s97, 1
        %s208 = scalar_lea.sflag [#allocation4], %s207
        %s209 = sand.u32 %s97, 1
        %s210 = smul.addr %s209, 96
        %s211 = scalar_lea.vmem [#allocation8], %s210
        %v212 = vld [vmem:[%s181] sm:$0xff]
        %v213 = vld [vmem:[%s181 + $0x8] sm:$0xff]
        %v214 = vld [vmem:[%s181 + $0x10] sm:$0xff]
        %v215 = vld [vmem:[%s181 + $0x18] sm:$0xff]
        %v216 = vld [vmem:[%s181 + $0x20] sm:$0xff]
        %v217 = vld [vmem:[%s181 + $0x28] sm:$0xff]
        %v218 = vld [vmem:[%s181 + $0x30] sm:$0xff]
        %v219 = vld [vmem:[%s181 + $0x38] sm:$0xff]
        %v220 = vld [vmem:[%s181 + $0x40] sm:$0xff]
        %v221 = vld [vmem:[%s181 + $0x48] sm:$0xff]
        %v222 = vld [vmem:[%s181 + $0x50] sm:$0xff]
        %v223 = vld [vmem:[%s181 + $0x58] sm:$0xff]
        %224 = vrot.lane.b32.xlu0 %v212, 127
        %v225 = vpop.permute.xlu0 %224
        %226 = vrot.lane.b32.xlu0 %v213, 127
        %v227 = vpop.permute.xlu0 %226
        %228 = vrot.lane.b32.xlu0 %v214, 127
        %v229 = vpop.permute.xlu0 %228
        %230 = vrot.lane.b32.xlu0 %v215, 127
        %v231 = vpop.permute.xlu0 %230
        %232 = vrot.lane.b32.xlu0 %v216, 127
        %v233 = vpop.permute.xlu0 %232
        %234 = vrot.lane.b32.xlu0 %v217, 127
        %v235 = vpop.permute.xlu0 %234
        %236 = vrot.lane.b32.xlu0 %v218, 127
        %v237 = vpop.permute.xlu0 %236
        %238 = vrot.lane.b32.xlu0 %v219, 127
        %v239 = vpop.permute.xlu0 %238
        %240 = vrot.lane.b32.xlu0 %v220, 127
        %v241 = vpop.permute.xlu0 %240
        %242 = vrot.lane.b32.xlu0 %v221, 127
        %v243 = vpop.permute.xlu0 %242
        %244 = vrot.lane.b32.xlu0 %v222, 127
        %v245 = vpop.permute.xlu0 %244
        %246 = vrot.lane.b32.xlu0 %v223, 127
        %v247 = vpop.permute.xlu0 %246
        %v248 = vlaneseq
        %v249 = vand.u32 %v248, 127
        %vm250 = vcmp.lt.s32.totalorder %v249, 127
        %v251 = vsel %vm250, %v245, %v247
        %v252 = vsel %vm250, %v243, %v245
        %v253 = vsel %vm250, %v241, %v243
        %v254 = vsel %vm250, %v239, %v241
        %v255 = vsel %vm250, %v237, %v239
        %v256 = vsel %vm250, %v235, %v237
        %v257 = vsel %vm250, %v233, %v235
        %v258 = vsel %vm250, %v231, %v233
        %v259 = vsel %vm250, %v229, %v231
        %v260 = vsel %vm250, %v227, %v229
        %v261 = vsel %vm250, %v225, %v227
        %v262 = vsel %vm250, %v247, %v225
        %263 = vrot.lane.b32.xlu0 %v212, 2
        %v264 = vpop.permute.xlu0 %263
        %265 = vrot.lane.b32.xlu0 %v213, 2
        %v266 = vpop.permute.xlu0 %265
        %267 = vrot.lane.b32.xlu0 %v214, 2
        %v268 = vpop.permute.xlu0 %267
        %269 = vrot.lane.b32.xlu0 %v215, 2
        %v270 = vpop.permute.xlu0 %269
        %271 = vrot.lane.b32.xlu0 %v216, 2
        %v272 = vpop.permute.xlu0 %271
        %273 = vrot.lane.b32.xlu0 %v217, 2
        %v274 = vpop.permute.xlu0 %273
        %275 = vrot.lane.b32.xlu0 %v218, 2
        %v276 = vpop.permute.xlu0 %275
        %277 = vrot.lane.b32.xlu0 %v219, 2
        %v278 = vpop.permute.xlu0 %277
        %279 = vrot.lane.b32.xlu0 %v220, 2
        %v280 = vpop.permute.xlu0 %279
        %281 = vrot.lane.b32.xlu0 %v221, 2
        %v282 = vpop.permute.xlu0 %281
        %283 = vrot.lane.b32.xlu0 %v222, 2
        %v284 = vpop.permute.xlu0 %283
        %285 = vrot.lane.b32.xlu0 %v223, 2
        %v286 = vpop.permute.xlu0 %285
        %vm287 = vcmp.lt.s32.totalorder %v249, 2
        %v288 = vsel %vm287, %v284, %v286
        %v289 = vsel %vm287, %v282, %v284
        %v290 = vsel %vm287, %v280, %v282
        %v291 = vsel %vm287, %v278, %v280
        %v292 = vsel %vm287, %v276, %v278
        %v293 = vsel %vm287, %v274, %v276
        %v294 = vsel %vm287, %v272, %v274
        %v295 = vsel %vm287, %v270, %v272
        %v296 = vsel %vm287, %v268, %v270
        %v297 = vsel %vm287, %v266, %v268
        %v298 = vsel %vm287, %v264, %v266
        %v299 = vsel %vm287, %v286, %v264
        %v300 = vld [vmem:[#allocation5] sm:$0xff]
        %v301 = vld [vmem:[#allocation5 + $0x8] sm:$0xf]
        %v304 = vlaneseq
        %v305 = vshrl.u32 %v304, 7
        %v306 = vsub.s32 0, %v305
        %v307 = vrot.slane %v300, %v306
        %v308 = vlaneseq
        %v309 = vshrl.u32 %v308, 7
        %v310 = vsub.s32 1, %v309
        %v311 = vrot.slane %v300, %v310
        %v312 = vlaneseq
        %v313 = vshrl.u32 %v312, 7
        %v314 = vsub.s32 2, %v313
        %v315 = vrot.slane %v300, %v314
        %v316 = vlaneseq
        %v317 = vshrl.u32 %v316, 7
        %v318 = vsub.s32 3, %v317
        %v319 = vrot.slane %v300, %v318
        %v320 = vlaneseq
        %v321 = vshrl.u32 %v320, 7
        %v322 = vsub.s32 4, %v321
        %v323 = vrot.slane %v300, %v322
        %v324 = vlaneseq
        %v325 = vshrl.u32 %v324, 7
        %v326 = vsub.s32 5, %v325
        %v327 = vrot.slane %v300, %v326
        %v328 = vlaneseq
        %v329 = vshrl.u32 %v328, 7
        %v330 = vsub.s32 6, %v329
        %v331 = vrot.slane %v300, %v330
        %v332 = vlaneseq
        %v333 = vshrl.u32 %v332, 7
        %v334 = vsub.s32 7, %v333
        %v335 = vrot.slane %v300, %v334
        %v336 = vlaneseq
        %v337 = vshrl.u32 %v336, 7
        %v338 = vsub.s32 0, %v337
        %v339 = vrot.slane %v301, %v338
        %v340 = vlaneseq
        %v341 = vshrl.u32 %v340, 7
        %v342 = vsub.s32 1, %v341
        %v343 = vrot.slane %v301, %v342
        %v344 = vlaneseq
        %v345 = vshrl.u32 %v344, 7
        %v346 = vsub.s32 2, %v345
        %v347 = vrot.slane %v301, %v346
        %v348 = vlaneseq
        %v349 = vshrl.u32 %v348, 7
        %v350 = vsub.s32 3, %v349
        %v351 = vrot.slane %v301, %v350
        %v364 = vmul.f32 %v307, %v261
        %v365 = vmul.f32 %v311, %v260
        %v366 = vmul.f32 %v315, %v259
        %v367 = vmul.f32 %v319, %v258
        %v368 = vmul.f32 %v323, %v257
        %v369 = vmul.f32 %v327, %v256
        %v370 = vmul.f32 %v331, %v255
        %v371 = vmul.f32 %v335, %v254
        %v372 = vmul.f32 %v339, %v253
        %v373 = vmul.f32 %v343, %v252
        %v374 = vmul.f32 %v347, %v251
        %v375 = vmul.f32 %v351, %v262
        %v376 = vadd.f32 %v212, %v364
        %v377 = vadd.f32 %v213, %v365
        %v378 = vadd.f32 %v214, %v366
        %v379 = vadd.f32 %v215, %v367
        %v380 = vadd.f32 %v216, %v368
        %v381 = vadd.f32 %v217, %v369
        %v382 = vadd.f32 %v218, %v370
        %v383 = vadd.f32 %v219, %v371
        %v384 = vadd.f32 %v220, %v372
        %v385 = vadd.f32 %v221, %v373
        %v386 = vadd.f32 %v222, %v374
        %v387 = vadd.f32 %v223, %v375
        %v388 = vld [vmem:[#allocation7] sm:$0xff]
        %v389 = vld [vmem:[#allocation7 + $0x8] sm:$0xf]
        %v392 = vlaneseq
        %v393 = vshrl.u32 %v392, 7
        %v394 = vsub.s32 0, %v393
        %v395 = vrot.slane %v388, %v394
        %v396 = vlaneseq
        %v397 = vshrl.u32 %v396, 7
        %v398 = vsub.s32 1, %v397
        %v399 = vrot.slane %v388, %v398
        %v400 = vlaneseq
        %v401 = vshrl.u32 %v400, 7
        %v402 = vsub.s32 2, %v401
        %v403 = vrot.slane %v388, %v402
        %v404 = vlaneseq
        %v405 = vshrl.u32 %v404, 7
        %v406 = vsub.s32 3, %v405
        %v407 = vrot.slane %v388, %v406
        %v408 = vlaneseq
        %v409 = vshrl.u32 %v408, 7
        %v410 = vsub.s32 4, %v409
        %v411 = vrot.slane %v388, %v410
        %v412 = vlaneseq
        %v413 = vshrl.u32 %v412, 7
        %v414 = vsub.s32 5, %v413
        %v415 = vrot.slane %v388, %v414
        %v416 = vlaneseq
        %v417 = vshrl.u32 %v416, 7
        %v418 = vsub.s32 6, %v417
        %v419 = vrot.slane %v388, %v418
        %v420 = vlaneseq
        %v421 = vshrl.u32 %v420, 7
        %v422 = vsub.s32 7, %v421
        %v423 = vrot.slane %v388, %v422
        %v424 = vlaneseq
        %v425 = vshrl.u32 %v424, 7
        %v426 = vsub.s32 0, %v425
        %v427 = vrot.slane %v389, %v426
        %v428 = vlaneseq
        %v429 = vshrl.u32 %v428, 7
        %v430 = vsub.s32 1, %v429
        %v431 = vrot.slane %v389, %v430
        %v432 = vlaneseq
        %v433 = vshrl.u32 %v432, 7
        %v434 = vsub.s32 2, %v433
        %v435 = vrot.slane %v389, %v434
        %v436 = vlaneseq
        %v437 = vshrl.u32 %v436, 7
        %v438 = vsub.s32 3, %v437
        %v439 = vrot.slane %v389, %v438
        %v452 = vmul.f32 %v395, %v299
        %v453 = vmul.f32 %v399, %v298
        %v454 = vmul.f32 %v403, %v297
        %v455 = vmul.f32 %v407, %v296
        %v456 = vmul.f32 %v411, %v295
        %v457 = vmul.f32 %v415, %v294
        %v458 = vmul.f32 %v419, %v293
        %v459 = vmul.f32 %v423, %v292
        %v460 = vmul.f32 %v427, %v291
        %v461 = vmul.f32 %v431, %v290
        %v462 = vmul.f32 %v435, %v289
        %v463 = vmul.f32 %v439, %v288
        %v464 = vadd.f32 %v376, %v452
        %v465 = vadd.f32 %v377, %v453
        %v466 = vadd.f32 %v378, %v454
        %v467 = vadd.f32 %v379, %v455
        %v468 = vadd.f32 %v380, %v456
        %v469 = vadd.f32 %v381, %v457
        %v470 = vadd.f32 %v382, %v458
        %v471 = vadd.f32 %v383, %v459
        %v472 = vadd.f32 %v384, %v460
        %v473 = vadd.f32 %v385, %v461
        %v474 = vadd.f32 %v386, %v462
        %v475 = vadd.f32 %v387, %v463
        %476 = vst [vmem:[%s211] sm:$0xff] %v464
        %477 = vst [vmem:[%s211 + $0x8] sm:$0xff] %v465
        %478 = vst [vmem:[%s211 + $0x10] sm:$0xff] %v466
        %479 = vst [vmem:[%s211 + $0x18] sm:$0xff] %v467
        %480 = vst [vmem:[%s211 + $0x20] sm:$0xff] %v468
        %481 = vst [vmem:[%s211 + $0x28] sm:$0xff] %v469
        %482 = vst [vmem:[%s211 + $0x30] sm:$0xff] %v470
        %483 = vst [vmem:[%s211 + $0x38] sm:$0xff] %v471
        %484 = vst [vmem:[%s211 + $0x40] sm:$0xff] %v472
        %485 = vst [vmem:[%s211 + $0x48] sm:$0xff] %v473
        %486 = vst [vmem:[%s211 + $0x50] sm:$0xff] %v474
        %487 = vst [vmem:[%s211 + $0x58] sm:$0xff] %v475
        %s488 = sand.u32 %s97, 1
        %s489 = scalar_lea.sflag [#allocation4], %s488
        %s490 = sand.u32 %s97, 1
        %s491 = smul.addr %s490, 96
        %s492 = scalar_lea.vmem [#allocation8], %s491
        // Predicated region
        $region45: #{tpu_custom_call.1} parent=31 // pred_check
          %p493 = pneg %p107
        $region46: #{tpu_custom_call.1} parent=31 // pred_check_branch
          %495 = sbr.rel (%p493) target = $region48
        $region47: #{tpu_custom_call.1} parent=31 // pred_region
          %s497 = ssub.s32 1536, 1536
          %498 = vsyncadd %s489, %s497
          %s499 = smul.addr %s21, 12
          %s500 = smul.addr %s499, 128
          %s501 = scalar_lea.hbm %s3, %s500
          %s503 = sshll.u32 %s492, 4
          %s504 = int_to_ptr.vmem [resolvable:$true] %s503
          %506 = dma.vmem_to_hbm [thread:$0]  %s504, 1536, %s501, %s489
        $region48: #{tpu_custom_call.1} parent=31 // pred_fallthru
          _
      $region32: #{tpu_custom_call.1} parent=5 // pred_fallthru
        _
      %p507 = scmp.le.s32.totalorder 2, %s16
      // Predicated region
      $region49: #{tpu_custom_call.1} parent=5 // pred_check
        %p508 = pneg %p507
      $region50: #{tpu_custom_call.1} parent=5 // pred_check_branch
        %510 = sbr.rel (%p508) target = $region52
      $region51: #{tpu_custom_call.1} parent=5 // pred_region
        %s511 = ssub.s32 %s16, 2
        // Predicated region
        $region53: #{tpu_custom_call.1} parent=51 // pred_check
          %p512 = pneg %p113
        $region54: #{tpu_custom_call.1} parent=51 // pred_check_branch
          %514 = sbr.rel (%p512) target = $region56
        $region55: #{tpu_custom_call.1} parent=51 // pred_region
          %s515 = sand.u32 %s98, 1
          %s516 = scalar_lea.sflag [#allocation4], %s515
          %s517 = sand.u32 %s98, 1
          %s518 = smul.addr %s517, 96
          %s519 = scalar_lea.vmem [#allocation8], %s518
          %520 = dma.done %s516, 1536
        $region56: #{tpu_custom_call.1} parent=51 // pred_fallthru
          _
      $region52: #{tpu_custom_call.1} parent=5 // pred_fallthru
        _
    $region6: #{tpu_custom_call.1} parent=1 // loop_footer
      %s20 = sadd.s32 1, %s16
    $region7: #{tpu_custom_call.1} parent=1 // loop_footer_branch
      %15 = sbr.rel target = $region3
    $region8: #{tpu_custom_call.1} parent=1 // loop_exit
      _
    %521 = vsyncpa [#allocation3], 1
    %s522 = scalar_lea.sflag [#allocation3], 1
    %523 = vsyncpa %s522, 1
    %524 = vsyncpa [#allocation6], 1
    %525 = vsyncpa [#allocation4], 1
    %s526 = scalar_lea.sflag [#allocation4], 1
    %527 = vsyncpa %s526, 1

</llo_original>
